<compile_context>
chip_gen: v7x
topology: tpu7x:2x2x1
jax: 0.10.0
libtpu: 0.0.40
codegen_flags: <defaults>
</compile_context>

<pallas_src>
import functools

import jax
import jax.numpy as jnp
from jax import lax
from jax.experimental import pallas as pl
from jax.experimental.pallas import tpu as pltpu

LANES = 128
SUB_ROWS = 32            # per-iteration accumulation block (rows), multiple of 8
_SMOOTH = 1e-08


def _jaccard_kernel(pred_ref, target_ref, out_i_ref, out_s_ref,
                    acc_i_ref, acc_s_ref, *,
                    steps_per_chunk, last_block, nsub_full, nsub_last,
                    uniform):
    """Accumulates sum(sigmoid(pred)*target) and sum(sigmoid(pred)+target)."""
    s = pl.program_id(1)

    @pl.when(s == 0)
    def _():
        acc_i_ref[...] = jnp.zeros_like(acc_i_ref)
        acc_s_ref[...] = jnp.zeros_like(acc_s_ref)

    def accumulate(num_sub):
        # Fused cast/sigmoid/mul/add/accumulate over (SUB_ROWS, 128) slices.
        # The two (SUB_ROWS, 128) f32 accumulators ride as fori_loop carries
        # (register resident): 2 * SUB_ROWS/8 independent add chains, no
        # tile-sized f32 temporaries, no cross-lane reduction in the kernel.
        def body(j, carry):
            acc_i, acc_s = carry
            off = pl.multiple_of(j * SUB_ROWS, SUB_ROWS)
            x = pred_ref[pl.ds(off, SUB_ROWS), :].astype(jnp.float32)
            t = target_ref[pl.ds(off, SUB_ROWS), :].astype(jnp.float32)
            p = 1.0 / (1.0 + jnp.exp(-x))          # sigmoid; exp/div -> EUP slot
            return acc_i + p * t, acc_s + (p + t)

        acc_i, acc_s = lax.fori_loop(
            0, num_sub, body, (acc_i_ref[...], acc_s_ref[...]),
            unroll=min(8, num_sub))
        acc_i_ref[...] = acc_i
        acc_s_ref[...] = acc_s

    if uniform:
        # Every grid step owns a full (tile_rows, 128) block: hot path has no
        # masking, no index math, no duplicate handling.
        accumulate(nsub_full)
    else:
        blk = pl.program_id(0) * steps_per_chunk + s

        @pl.when(blk < last_block)          # all guaranteed-full tiles
        def _():
            accumulate(nsub_full)

        @pl.when(blk == last_block)         # single (possibly shorter) final tile
        def _():
            accumulate(nsub_last)
        # blk > last_block (clamped duplicate from an uneven chunk split):
        # skipped entirely by the scalar guards above.

    @pl.when(s == pl.num_programs(1) - 1)
    def _():
        out_i_ref[0] = acc_i_ref[...]
        out_s_ref[0] = acc_s_ref[...]


def _device_defaults():
    kind = ""
    try:
        kind = jax.devices()[0].device_kind.lower()
    except Exception:
        pass
    is_v7x = ("v7" in kind) or ("7x" in kind)
    multi_tc = is_v7x or ("v4" in kind) or ("v5p" in kind)
    if is_v7x:
        # 64 MiB physical VMEM: <=4 MiB per input block, scoped limit 48 MiB,
        # 2 chunks so the "parallel" axis shards across the two TensorCores.
        return 8192, 2, 48 * (1 << 20)
    # v5e / v6e (single TensorCore, 128 MiB VMEM): one chunk, big tiles to
    # amortize the ~0.35us per-grid-step overhead.
    return 16384, (2 if multi_tc else 1), 100 * (1 << 20)


def _prep(x, pad_value, n_pad):
    x = x.reshape(-1)
    if not (x.dtype == jnp.float32 or x.dtype == jnp.bfloat16):
        x = x.astype(jnp.float32)
    if n_pad:
        x = jnp.pad(x, (0, n_pad), constant_values=pad_value)
    return x


@functools.partial(jax.jit, static_argnames=("tile_rows", "num_chunks"))
def jaccard_index(pred, target, *, tile_rows=None, num_chunks=None):
    """Pallas implementation of JaccardIndex.forward(pred, target)."""
    n = pred.size
    assert target.size == n, "pred/target element counts must match"

    default_tr, default_nc, vmem_cap = _device_defaults()
    if tile_rows is None:
        tile_rows = default_tr
    if num_chunks is None:
        num_chunks = default_nc

    # Pad the flattened inputs to a multiple of SUB_ROWS*LANES.  pred padded
    # with -inf (sigmoid -> 0) and target with 0 means padded elements
    # contribute exactly zero to both sums -> no in-kernel masking at all.
    n_pad = (-n) % (SUB_ROWS * LANES)
    pred_f = _prep(pred, float("-inf"), n_pad)
    target_f = _prep(target, 0, n_pad)

    rows = (n + n_pad) // LANES                  # multiple of SUB_ROWS
    pred_2d = pred_f.reshape(rows, LANES)
    target_2d = target_f.reshape(rows, LANES)

    # Tile rows: multiple of SUB_ROWS, no bigger than the array.
    tr = max(SUB_ROWS, (min(tile_rows, rows) // SUB_ROWS) * SUB_ROWS)

    total_steps = pl.cdiv(rows, tr)
    last_block = total_steps - 1
    rows_last = rows - last_block * tr           # in (0, tr], multiple of SUB_ROWS
    nsub_full = tr // SUB_ROWS
    nsub_last = rows_last // SUB_ROWS

    nc = max(1, min(num_chunks, total_steps))
    steps_per_chunk = pl.cdiv(total_steps, nc)
    has_tail = nc * steps_per_chunk != total_steps
    uniform = (not has_tail) and (nsub_last == nsub_full)

    if has_tail:
        def in_index_map(c, s):
            # Clamp so the duplicated tail step still DMAs in bounds; its
            # accumulation is skipped by a scalar pl.when in the kernel.
            return (jnp.minimum(c * steps_per_chunk + s, last_block), 0)
    else:
        def in_index_map(c, s):
            return (c * steps_per_chunk + s, 0)

    kernel = functools.partial(
        _jaccard_kernel,
        steps_per_chunk=steps_per_chunk,
        last_block=last_block,
        nsub_full=nsub_full,
        nsub_last=nsub_last,
        uniform=uniform,
    )

    # VMEM budget: double-buffered input blocks + small accumulators/outputs
    # with ~30% headroom, capped per generation (64 MiB physical on v7x).
    block_bytes = tr * LANES * (pred_2d.dtype.itemsize +
                                target_2d.dtype.itemsize)
    vmem_need = 2 * block_bytes + (1 << 20)
    vmem_limit = int(min(max(int(vmem_need * 1.3), 32 << 20), vmem_cap))

    n_total = rows * LANES
    cost = pl.CostEstimate(
        flops=8 * n_total,
        transcendentals=n_total,
        bytes_accessed=block_bytes * total_steps
        + nc * 2 * SUB_ROWS * LANES * 4,
    )

    out_i, out_s = pl.pallas_call(
        kernel,
        out_shape=(
            jax.ShapeDtypeStruct((nc, SUB_ROWS, LANES), jnp.float32),
            jax.ShapeDtypeStruct((nc, SUB_ROWS, LANES), jnp.float32),
        ),
        grid_spec=pltpu.PrefetchScalarGridSpec(
            num_scalar_prefetch=0,
            grid=(nc, steps_per_chunk),
            in_specs=[
                pl.BlockSpec((tr, LANES), in_index_map),
                pl.BlockSpec((tr, LANES), in_index_map),
            ],
            out_specs=[
                pl.BlockSpec((1, SUB_ROWS, LANES), lambda c, s: (c, 0, 0)),
                pl.BlockSpec((1, SUB_ROWS, LANES), lambda c, s: (c, 0, 0)),
            ],
            scratch_shapes=[
                pltpu.VMEM((SUB_ROWS, LANES), jnp.float32),
                pltpu.VMEM((SUB_ROWS, LANES), jnp.float32),
            ],
        ),
        compiler_params=pltpu.CompilerParams(
            dimension_semantics=("parallel", "arbitrary"),
            vmem_limit_bytes=vmem_limit,
        ),
        cost_estimate=cost,
    )(pred_2d, target_2d)

    intersection = jnp.sum(out_i, dtype=jnp.float32)
    union = jnp.sum(out_s, dtype=jnp.float32) - intersection
    smooth = jnp.float32(_SMOOTH)
    return (intersection + smooth) / (union + smooth)


def _reference(pred, target):
    p = jax.nn.sigmoid(pred.reshape(-1).astype(jnp.float32))
    t = target.reshape(-1).astype(jnp.float32)
    smooth = 1e-08
    inter = jnp.sum(p * t)
    union = jnp.sum(p + t) - inter
    return (inter + smooth) / (union + smooth)


if __name__ == "__main__":
    key = jax.random.PRNGKey(0)
    k1, k2 = jax.random.split(key)
    # Small segmentation-style shapes: (B, C, H, W).
    shape = (2, 4, 16, 16)
    pred = jax.random.normal(k1, shape, dtype=jnp.float32)
    target = (jax.random.uniform(k2, shape) > 0.5).astype(jnp.float32)

    out = jaccard_index(pred, target)
    out = jax.block_until_ready(out)

    ref = _reference(pred, target)
    assert jnp.allclose(out, ref, rtol=1e-5, atol=1e-6), (out, ref)
    print("KERNEL_OK")
</pallas_src>

<mosaic_0001>
module attributes {stable_mosaic.version = 11 : i64} {
  func.func @_jaccard_kernel(%arg0: i32, %arg1: i32, %arg2: memref<32x128xf32, #tpu.memory_space<vmem>>, %arg3: memref<32x128xf32, #tpu.memory_space<vmem>>, %arg4: memref<1x32x128xf32, #tpu.memory_space<vmem>>, %arg5: memref<1x32x128xf32, #tpu.memory_space<vmem>>, %arg6: memref<32x128xf32, #tpu.memory_space<vmem>>, %arg7: memref<32x128xf32, #tpu.memory_space<vmem>>) attributes {dimension_semantics = [#tpu.dimension_semantics<parallel>, #tpu.dimension_semantics<arbitrary>], iteration_bounds = array<i64: 1, 1>, scalar_prefetch = 0 : i64, scratch_operands = 2 : i64, tpu.core_type = #tpu.core_type<tc>, window_params = [{transform_indices = @transform_0, window_bounds = array<i64: 32, 128>}, {transform_indices = @transform_1, window_bounds = array<i64: 32, 128>}, {transform_indices = @transform_2, window_bounds = array<i64: 1, 32, 128>}, {transform_indices = @transform_3, window_bounds = array<i64: 1, 32, 128>}]} {
    %c0_i32 = arith.constant 0 : i32
    %0 = arith.cmpi eq, %arg1, %c0_i32 : i32
    %1 = arith.extui %0 : i1 to i32
    %c0_i32_0 = arith.constant 0 : i32
    %2 = arith.cmpi ne, %1, %c0_i32_0 : i32
    scf.if %2 {
      %cst_15 = arith.constant 0.000000e+00 : f32
      %27 = vector.broadcast %cst_15 : f32 to vector<32x128xf32>
      %c0_16 = arith.constant 0 : index
      %c0_17 = arith.constant 0 : index
      %28 = vector.load %arg6[%c0_16, %c0_17] : memref<32x128xf32, #tpu.memory_space<vmem>>, vector<32x128xf32>
      tpu.vector_store %arg6[%c0_16, %c0_17], %27 {strides = array<i32>} : memref<32x128xf32, #tpu.memory_space<vmem>>, vector<32x128xf32>,
      %cst_18 = arith.constant 0.000000e+00 : f32
      %29 = vector.broadcast %cst_18 : f32 to vector<32x128xf32>
      %c0_19 = arith.constant 0 : index
      %c0_20 = arith.constant 0 : index
      %30 = vector.load %arg7[%c0_19, %c0_20] : memref<32x128xf32, #tpu.memory_space<vmem>>, vector<32x128xf32>
      tpu.vector_store %arg7[%c0_19, %c0_20], %29 {strides = array<i32>} : memref<32x128xf32, #tpu.memory_space<vmem>>, vector<32x128xf32>,
    } else {
    }
    %c0 = arith.constant 0 : index
    %c0_1 = arith.constant 0 : index
    %3 = vector.load %arg6[%c0, %c0_1] : memref<32x128xf32, #tpu.memory_space<vmem>>, vector<32x128xf32>
    %c0_2 = arith.constant 0 : index
    %c0_3 = arith.constant 0 : index
    %4 = vector.load %arg7[%c0_2, %c0_3] : memref<32x128xf32, #tpu.memory_space<vmem>>, vector<32x128xf32>
    %c0_i32_4 = arith.constant 0 : i32
    %c32_i32 = arith.constant 32 : i32
    %5 = arith.muli %c0_i32_4, %c32_i32 : i32
    %6 = tpu.assume_multiple %5, 32 : i32
    %7 = arith.index_cast %6 : i32 to index
    %c0_5 = arith.constant 0 : index
    %8 = vector.load %arg2[%7, %c0_5] : memref<32x128xf32, #tpu.memory_space<vmem>>, vector<32x128xf32>
    %9 = arith.index_cast %6 : i32 to index
    %c0_6 = arith.constant 0 : index
    %10 = vector.load %arg3[%9, %c0_6] : memref<32x128xf32, #tpu.memory_space<vmem>>, vector<32x128xf32>
    %cst = arith.constant 0.000000e+00 : f32
    %11 = vector.broadcast %cst : f32 to vector<32x128xf32>
    %12 = arith.subf %11, %8 : vector<32x128xf32>
    %13 = math.exp %12 : vector<32x128xf32>
    %cst_7 = arith.constant 1.000000e+00 : f32
    %14 = vector.broadcast %cst_7 : f32 to vector<32x128xf32>
    %15 = arith.addf %14, %13 : vector<32x128xf32>
    %cst_8 = arith.constant 1.000000e+00 : f32
    %16 = vector.broadcast %cst_8 : f32 to vector<32x128xf32>
    %17 = arith.divf %16, %15 : vector<32x128xf32>
    %18 = arith.mulf %17, %10 : vector<32x128xf32>
    %19 = arith.addf %3, %18 : vector<32x128xf32>
    %20 = arith.addf %17, %10 : vector<32x128xf32>
    %21 = arith.addf %4, %20 : vector<32x128xf32>
    %c1_i32 = arith.constant 1 : i32
    %c0_9 = arith.constant 0 : index
    %c0_10 = arith.constant 0 : index
    %22 = vector.load %arg6[%c0_9, %c0_10] : memref<32x128xf32, #tpu.memory_space<vmem>>, vector<32x128xf32>
    tpu.vector_store %arg6[%c0_9, %c0_10], %19 {strides = array<i32>} : memref<32x128xf32, #tpu.memory_space<vmem>>, vector<32x128xf32>,
    %c0_11 = arith.constant 0 : index
    %c0_12 = arith.constant 0 : index
    %23 = vector.load %arg7[%c0_11, %c0_12] : memref<32x128xf32, #tpu.memory_space<vmem>>, vector<32x128xf32>
    tpu.vector_store %arg7[%c0_11, %c0_12], %21 {strides = array<i32>} : memref<32x128xf32, #tpu.memory_space<vmem>>, vector<32x128xf32>,
    %c0_i32_13 = arith.constant 0 : i32
    %24 = arith.cmpi eq, %arg1, %c0_i32_13 : i32
    %25 = arith.extui %24 : i1 to i32
    %c0_i32_14 = arith.constant 0 : i32
    %26 = arith.cmpi ne, %25, %c0_i32_14 : i32
    scf.if %26 {
      %c0_15 = arith.constant 0 : index
      %c0_16 = arith.constant 0 : index
      %27 = vector.load %arg6[%c0_15, %c0_16] : memref<32x128xf32, #tpu.memory_space<vmem>>, vector<32x128xf32>
      %c0_17 = arith.constant 0 : index
      %c0_18 = arith.constant 0 : index
      %c0_19 = arith.constant 0 : index
      %28 = vector.load %arg4[%c0_17, %c0_18, %c0_19] : memref<1x32x128xf32, #tpu.memory_space<vmem>>, vector<1x32x128xf32>
      %29 = vector.shape_cast %28 : vector<1x32x128xf32> to vector<32x128xf32>
      %30 = vector.shape_cast %27 : vector<32x128xf32> to vector<1x32x128xf32>
      tpu.vector_store %arg4[%c0_17, %c0_18, %c0_19], %30 {strides = array<i32>} : memref<1x32x128xf32, #tpu.memory_space<vmem>>, vector<1x32x128xf32>,
      %c0_20 = arith.constant 0 : index
      %c0_21 = arith.constant 0 : index
      %31 = vector.load %arg7[%c0_20, %c0_21] : memref<32x128xf32, #tpu.memory_space<vmem>>, vector<32x128xf32>
      %c0_22 = arith.constant 0 : index
      %c0_23 = arith.constant 0 : index
      %c0_24 = arith.constant 0 : index
      %32 = vector.load %arg5[%c0_22, %c0_23, %c0_24] : memref<1x32x128xf32, #tpu.memory_space<vmem>>, vector<1x32x128xf32>
      %33 = vector.shape_cast %32 : vector<1x32x128xf32> to vector<32x128xf32>
      %34 = vector.shape_cast %31 : vector<32x128xf32> to vector<1x32x128xf32>
      tpu.vector_store %arg5[%c0_22, %c0_23, %c0_24], %34 {strides = array<i32>} : memref<1x32x128xf32, #tpu.memory_space<vmem>>, vector<1x32x128xf32>,
    } else {
    }
    return
  }
  func.func @transform_0(%arg0: i32, %arg1: i32) -> (i32, i32) {
    %c1_i32 = arith.constant 1 : i32
    %0 = arith.muli %arg0, %c1_i32 : i32
    %1 = arith.addi %0, %arg1 : i32
    %c0_i32 = arith.constant 0 : i32
    %c0_i32_0 = arith.constant 0 : i32
    return %1, %c0_i32 : i32, i32
  }
  func.func @transform_1(%arg0: i32, %arg1: i32) -> (i32, i32) {
    %c1_i32 = arith.constant 1 : i32
    %0 = arith.muli %arg0, %c1_i32 : i32
    %1 = arith.addi %0, %arg1 : i32
    %c0_i32 = arith.constant 0 : i32
    %c0_i32_0 = arith.constant 0 : i32
    return %1, %c0_i32 : i32, i32
  }
  func.func @transform_2(%arg0: i32, %arg1: i32) -> (i32, i32, i32) {
    %c0_i32 = arith.constant 0 : i32
    %c0_i32_0 = arith.constant 0 : i32
    %c0_i32_1 = arith.constant 0 : i32
    return %arg0, %c0_i32, %c0_i32_0 : i32, i32, i32
  }
  func.func @transform_3(%arg0: i32, %arg1: i32) -> (i32, i32, i32) {
    %c0_i32 = arith.constant 0 : i32
    %c0_i32_0 = arith.constant 0 : i32
    %c0_i32_1 = arith.constant 0 : i32
    return %arg0, %c0_i32, %c0_i32_0 : i32, i32, i32
  }
}

</mosaic_0001>

<llo_original>
// kernel: jaccard_index.1
$region0: #{jaccard_index.1}
  #allocation0 [shape = 'u32[]', space=smem, size = 0x4, offset = 0x4, fixed_abs, tag = 'smem constant byte address 0x4 - core index']
  #allocation1 [shape = 'u32[144,128]{1,0:T(1,128)}', space=vmem, size = 0x12000, scoped, tag = 'internal scratch']
  #allocation2 [shape = 'f32[32,128]{1,0:T(8,128)}', space=vmem, size = 0x4000, scoped, tag = 'scratch operand']
  #allocation3 [shape = 'f32[32,128]{1,0:T(8,128)}', space=vmem, size = 0x4000, scoped, tag = 'scratch operand']
  %s0 = inlined_call_operand.vmem [shape: f32[32,128], index: 0, kind: input, shape index: {}]
  %s1 = inlined_call_operand.vmem [shape: f32[32,128], index: 1, kind: input, shape index: {}]
  %s2 = inlined_call_operand.vmem [shape: f32[1,32,128], index: 2, kind: output, shape index: {0}]
  %s3 = inlined_call_operand.vmem [shape: f32[1,32,128], index: 3, kind: output, shape index: {1}]
  %4 = xla_tuple %s2, %s3
  %s5 = sld [smem:[#allocation0]]
  $region34: #{jaccard_index.1} parent=0
    _
  %s7 = ssub.s32 1, %s5
  %s8 = scalar_select 0, %s7, %s5
  // Predicated region
  $region2: #{jaccard_index.1} parent=0 // pred_check
    _
  $region3: #{jaccard_index.1} parent=0 // pred_check_branch
    %10 = sbr.rel (0) target = $region5
  $region4: #{jaccard_index.1} parent=0 // pred_region
    %s11 = sadd.s32 0, 0
    %s12 = smul.u32 4, %s11
    %p13 = scmp.lt.s32.totalorder %s12, 3
    %s14 = scalar_select %p13, %s12, 3
    %s15 = smul.addr %s14, 8
    %s16 = scalar_lea.vmem %s0, %s15
    %s17 = sadd.s32 0, 0
    %s18 = smul.u32 4, %s17
  $region5: #{jaccard_index.1} parent=0 // pred_fallthru
    _
  // Predicated region
  $region6: #{jaccard_index.1} parent=0 // pred_check
    _
  $region7: #{jaccard_index.1} parent=0 // pred_check_branch
    %20 = sbr.rel (0) target = $region9
  $region8: #{jaccard_index.1} parent=0 // pred_region
    %s21 = sadd.s32 0, 0
    %s22 = smul.u32 4, %s21
    %p23 = scmp.lt.s32.totalorder %s22, 3
    %s24 = scalar_select %p23, %s22, 3
    %s25 = smul.addr %s24, 8
    %s26 = scalar_lea.vmem %s1, %s25
    %s27 = sadd.s32 0, 0
    %s28 = smul.u32 4, %s27
  $region9: #{jaccard_index.1} parent=0 // pred_fallthru
    _
  %s29 = sadd.s32 0, 0
  %s30 = smul.u32 4, %s29
  %p31 = scmp.lt.s32.totalorder %s30, 3
  %s32 = scalar_select %p31, %s30, 3
  %s33 = smul.addr %s32, 8
  %s34 = scalar_lea.vmem %s0, %s33
  %s35 = sadd.s32 0, 0
  %s36 = smul.u32 4, %s35
  %p37 = scmp.lt.s32.totalorder %s36, 3
  %s38 = scalar_select %p37, %s36, 3
  %s39 = smul.addr %s38, 8
  %s40 = scalar_lea.vmem %s1, %s39
  %s41 = sadd.s32 0, 0
  %s42 = smul.u32 4, %s41
  %p43 = scmp.lt.s32.totalorder %s42, 3
  %s44 = scalar_select %p43, %s42, 3
  %s45 = smul.addr %s44, 8
  %s46 = scalar_lea.vmem %s0, %s45
  %s47 = sadd.s32 0, 0
  %s48 = smul.u32 4, %s47
  %s49 = sadd.s32 0, 0
  %s50 = smul.u32 4, %s49
  %p51 = scmp.lt.s32.totalorder %s50, 3
  %s52 = scalar_select %p51, %s50, 3
  %s53 = smul.addr %s52, 8
  %s54 = scalar_lea.vmem %s1, %s53
  %s55 = sadd.s32 0, 0
  %s56 = smul.u32 4, %s55
  %p57 = scmp.eq.s32.totalorder 0, 0
  // Predicated region
  $region10: #{jaccard_index.1} parent=0 // pred_check
    %p58 = pneg %p57
  $region11: #{jaccard_index.1} parent=0 // pred_check_branch
    %60 = sbr.rel (%p58) target = $region13
  $region12: #{jaccard_index.1} parent=0 // pred_region
    %61 = vst [vmem:[#allocation2] sm:$0xff] 0.0
    %62 = vst [vmem:[#allocation2 + $0x8] sm:$0xff] 0.0
    %63 = vst [vmem:[#allocation2 + $0x10] sm:$0xff] 0.0
    %64 = vst [vmem:[#allocation2 + $0x18] sm:$0xff] 0.0
    %65 = vst [vmem:[#allocation3] sm:$0xff] 0.0
    %66 = vst [vmem:[#allocation3 + $0x8] sm:$0xff] 0.0
    %67 = vst [vmem:[#allocation3 + $0x10] sm:$0xff] 0.0
    %68 = vst [vmem:[#allocation3 + $0x18] sm:$0xff] 0.0
  $region13: #{jaccard_index.1} parent=0 // pred_fallthru
    _
  %v69 = vld [vmem:[#allocation2] sm:$0xff]
  %v70 = vld [vmem:[#allocation2 + $0x8] sm:$0xff]
  %v71 = vld [vmem:[#allocation2 + $0x10] sm:$0xff]
  %v72 = vld [vmem:[#allocation2 + $0x18] sm:$0xff]
  %v73 = vld [vmem:[#allocation3] sm:$0xff]
  %v74 = vld [vmem:[#allocation3 + $0x8] sm:$0xff]
  %v75 = vld [vmem:[#allocation3 + $0x10] sm:$0xff]
  %v76 = vld [vmem:[#allocation3 + $0x18] sm:$0xff]
  %v77 = vld [vmem:[%s46] sm:$0xff]
  %v78 = vld [vmem:[%s46 + $0x8] sm:$0xff]
  %v79 = vld [vmem:[%s46 + $0x10] sm:$0xff]
  %v80 = vld [vmem:[%s46 + $0x18] sm:$0xff]
  %v81 = vld [vmem:[%s54] sm:$0xff]
  %v82 = vld [vmem:[%s54 + $0x8] sm:$0xff]
  %v83 = vld [vmem:[%s54 + $0x10] sm:$0xff]
  %v84 = vld [vmem:[%s54 + $0x18] sm:$0xff]
  %v85 = vsub.f32 0.0, %v77
  %v86 = vsub.f32 0.0, %v78
  %v87 = vsub.f32 0.0, %v79
  %v88 = vsub.f32 0.0, %v80
  %v89 = vmul.f32 %v85, 1.442695
  %v90 = vpow.pop %v89
  %v91 = vmul.f32 %v86, 1.442695
  %v92 = vpow.pop %v91
  %v93 = vmul.f32 %v87, 1.442695
  %v94 = vpow.pop %v93
  %v95 = vmul.f32 %v88, 1.442695
  %v96 = vpow.pop %v95
  %v97 = vadd.f32 %v90, 1.0
  %v98 = vadd.f32 %v92, 1.0
  %v99 = vadd.f32 %v94, 1.0
  %v100 = vadd.f32 %v96, 1.0
  %v101 = vrcp.pop %v97
  %v102 = vmul.f32 1.0, %v101
  %v103 = vrcp.pop %v98
  %v104 = vmul.f32 1.0, %v103
  %v105 = vrcp.pop %v99
  %v106 = vmul.f32 1.0, %v105
  %v107 = vrcp.pop %v100
  %v108 = vmul.f32 1.0, %v107
  %v109 = vmul.f32 %v102, %v81
  %v110 = vmul.f32 %v104, %v82
  %v111 = vmul.f32 %v106, %v83
  %v112 = vmul.f32 %v108, %v84
  %v113 = vadd.f32 %v69, %v109
  %v114 = vadd.f32 %v70, %v110
  %v115 = vadd.f32 %v71, %v111
  %v116 = vadd.f32 %v72, %v112
  %v117 = vadd.f32 %v102, %v81
  %v118 = vadd.f32 %v104, %v82
  %v119 = vadd.f32 %v106, %v83
  %v120 = vadd.f32 %v108, %v84
  %v121 = vadd.f32 %v73, %v117
  %v122 = vadd.f32 %v74, %v118
  %v123 = vadd.f32 %v75, %v119
  %v124 = vadd.f32 %v76, %v120
  %125 = vst [vmem:[#allocation2] sm:$0xff] %v113
  %126 = vst [vmem:[#allocation2 + $0x8] sm:$0xff] %v114
  %127 = vst [vmem:[#allocation2 + $0x10] sm:$0xff] %v115
  %128 = vst [vmem:[#allocation2 + $0x18] sm:$0xff] %v116
  %129 = vst [vmem:[#allocation3] sm:$0xff] %v121
  %130 = vst [vmem:[#allocation3 + $0x8] sm:$0xff] %v122
  %131 = vst [vmem:[#allocation3 + $0x10] sm:$0xff] %v123
  %132 = vst [vmem:[#allocation3 + $0x18] sm:$0xff] %v124
  // Predicated region
  $region14: #{jaccard_index.1} parent=0 // pred_check
    %p133 = pneg %p57
  $region15: #{jaccard_index.1} parent=0 // pred_check_branch
    %135 = sbr.rel (%p133) target = $region17
  $region16: #{jaccard_index.1} parent=0 // pred_region
    %v136 = vld [vmem:[#allocation2] sm:$0xff]
    %v137 = vld [vmem:[#allocation2 + $0x8] sm:$0xff]
    %v138 = vld [vmem:[#allocation2 + $0x10] sm:$0xff]
    %v139 = vld [vmem:[#allocation2 + $0x18] sm:$0xff]
    %140 = vst [vmem:[%s2] sm:$0xff] %v136
    %141 = vst [vmem:[%s2 + $0x8] sm:$0xff] %v137
    %142 = vst [vmem:[%s2 + $0x10] sm:$0xff] %v138
    %143 = vst [vmem:[%s2 + $0x18] sm:$0xff] %v139
    %v144 = vld [vmem:[#allocation3] sm:$0xff]
    %v145 = vld [vmem:[#allocation3 + $0x8] sm:$0xff]
    %v146 = vld [vmem:[#allocation3 + $0x10] sm:$0xff]
    %v147 = vld [vmem:[#allocation3 + $0x18] sm:$0xff]
    %148 = vst [vmem:[%s3] sm:$0xff] %v144
    %149 = vst [vmem:[%s3 + $0x8] sm:$0xff] %v145
    %150 = vst [vmem:[%s3 + $0x10] sm:$0xff] %v146
    %151 = vst [vmem:[%s3 + $0x18] sm:$0xff] %v147
  $region17: #{jaccard_index.1} parent=0 // pred_fallthru
    _
  // Predicated region
  $region18: #{jaccard_index.1} parent=0 // pred_check
    _
  $region19: #{jaccard_index.1} parent=0 // pred_check_branch
    %153 = sbr.rel (0) target = $region21
  $region20: #{jaccard_index.1} parent=0 // pred_region
    _
  $region21: #{jaccard_index.1} parent=0 // pred_fallthru
    _
  // Predicated region
  $region22: #{jaccard_index.1} parent=0 // pred_check
    _
  $region23: #{jaccard_index.1} parent=0 // pred_check_branch
    %155 = sbr.rel (0) target = $region25
  $region24: #{jaccard_index.1} parent=0 // pred_region
    _
  $region25: #{jaccard_index.1} parent=0 // pred_fallthru
    _
  // Predicated region
  $region26: #{jaccard_index.1} parent=0 // pred_check
    _
  $region27: #{jaccard_index.1} parent=0 // pred_check_branch
    %157 = sbr.rel (0) target = $region29
  $region28: #{jaccard_index.1} parent=0 // pred_region
    _
  $region29: #{jaccard_index.1} parent=0 // pred_fallthru
    _
  // Predicated region
  $region30: #{jaccard_index.1} parent=0 // pred_check
    _
  $region31: #{jaccard_index.1} parent=0 // pred_check_branch
    %159 = sbr.rel (0) target = $region33
  $region32: #{jaccard_index.1} parent=0 // pred_region
    _
  $region33: #{jaccard_index.1} parent=0 // pred_fallthru
    _

</llo_original>
